<compile_context>
chip_gen: v6e
topology: v6e:2x2x1
jax: 0.10.0
libtpu: 0.0.40
codegen_flags: <defaults>
</compile_context>

<pallas_src>
import functools

import jax
import jax.numpy as jnp
from jax.experimental import pallas as pl
from jax.experimental.pallas import tpu as pltpu

LANE = 128


def _round_up(x, m):
    return (x + m - 1) // m * m


def _cdiv(a, b):
    return -(-a // b)


def _tpu_vmem_capacity_bytes():
    """Per-core VMEM capacity (128 MiB v5e/v6e, 64 MiB v7x). Conservative fallback."""
    try:
        info = pltpu.get_tpu_info()
        for name in ("vmem_capacity_bytes", "vmem_bytes", "vmem_size_bytes"):
            cap = getattr(info, name, None)
            if cap:
                return int(cap)
    except Exception:
        pass
    return 64 << 20


# ---------------------------------------------------------------------------
# Kernels
# ---------------------------------------------------------------------------
def _full_kernel_ws(x_ref, w_ref, b_ref, o_ref):
    """Weight-stationary: full K and full N per step; grid over batch tiles only."""
    y = jnp.dot(x_ref[...], w_ref[...], preferred_element_type=jnp.float32)
    o_ref[...] = jnp.maximum(y + b_ref[...], 0.0).astype(o_ref.dtype)


def _full_kernel_acc(x_ref, w_ref, b_ref, o_ref, acc_ref):
    """K-accumulating path: bias folded into the k==0 init, ReLU at the last k."""
    k = pl.program_id(2)

    @pl.when(k == 0)
    def _():
        acc_ref[...] = jnp.broadcast_to(b_ref[...], acc_ref.shape)

    acc_ref[...] += jnp.dot(
        x_ref[...], w_ref[...], preferred_element_type=jnp.float32
    )

    @pl.when(k == pl.num_programs(2) - 1)
    def _():
        o_ref[...] = jnp.maximum(acc_ref[...], 0.0).astype(o_ref.dtype)


# ---------------------------------------------------------------------------
# Tile selection helpers (pure Python on static shapes)
# ---------------------------------------------------------------------------
def _pick_batch_tiling(B, sub_align, max_bb):
    """(B_pad, block_b): block_b is a sub_align multiple dividing B_pad, chosen to
    minimize padded rows of work plus a per-grid-step overhead proxy."""
    b_min = _round_up(B, sub_align)
    max_bb = min(max_bb, b_min, 2048)
    max_bb = max(sub_align, (max_bb // sub_align) * sub_align)
    best = None
    bb = sub_align
    while bb <= max_bb:
        b_pad = _round_up(B, bb)
        score = b_pad + 32 * (b_pad // bb)   # padded work + ~32 rows/step overhead
        key = (score, -bb)                   # tie -> larger block
        if best is None or key < best[0]:
            best = (key, bb, b_pad)
        bb += sub_align
    _, block_b, b_pad = best
    return b_pad, block_b


def _select_tiled_blocks(B, K_pad, N_pad, in_bytes, out_bytes, sub_align, budget,
                         block_b, block_n, block_k):
    """Tile selection for the K-accumulating path."""
    if block_k is None:
        block_k = min(K_pad, 512)
    else:
        block_k = min(_round_up(max(block_k, LANE), LANE), K_pad)

    def bb_from_budget(n):
        fixed = 2 * block_k * n * in_bytes + 2 * n * 4           # W tiles + bias
        per_row = (2 * block_k * in_bytes                        # x tile (dbl-buf)
                   + 2 * n * out_bytes                           # out tile (dbl-buf)
                   + n * 4)                                      # f32 accumulator
        if budget <= fixed + per_row * sub_align:
            return 0
        return int(min((budget - fixed) // per_row, 2048))

    if block_n is None:
        b_target = _round_up(B, sub_align)
        best = None
        for n in range(LANE, min(N_pad, 2048) + 1, LANE):
            bb = bb_from_budget(n)
            if bb < sub_align:
                continue
            bb_eff = min(bb, b_target)
            # arithmetic-intensity proxy, discounted for N-padding waste
            score = (bb_eff * n) / (bb_eff + n) * (N_pad / _round_up(N_pad, n))
            if best is None or (score, n) > best[0]:
                best = ((score, n), n)
        block_n = best[1] if best is not None else LANE
    else:
        block_n = min(_round_up(max(block_n, LANE), LANE), N_pad)

    max_bb = max(sub_align, bb_from_budget(block_n))
    if block_b is None:
        B_pad, block_b = _pick_batch_tiling(B, sub_align, max_bb)
    else:
        block_b = max(sub_align, (block_b // sub_align) * sub_align)
        block_b = min(block_b, _round_up(B, sub_align))
        B_pad = _round_up(B, block_b)

    return (block_b, block_n, block_k, B_pad,
            _round_up(N_pad, block_n), _round_up(K_pad, block_k))


# ---------------------------------------------------------------------------
# Public wrapper
# ---------------------------------------------------------------------------
@functools.partial(
    jax.jit, static_argnames=("block_b", "block_n", "block_k", "compute_dtype")
)
def full_forward(x, w_t, b, *, block_b=None, block_n=None, block_k=None,
                 compute_dtype=None):
    """ReLU(x @ w_t + b).  x: (B, N_in), w_t: (N_in, N_out), b: (N_out,)."""
    B, N_in = x.shape
    N_out = w_t.shape[1]
    out_dtype = x.dtype

    # NOTE: for repeated calls with the same weights, pre-cast w_t to
    # compute_dtype outside this function to avoid a per-call HBM pass.
    if compute_dtype is not None:
        if x.dtype != compute_dtype:
            x = x.astype(compute_dtype)
        if w_t.dtype != compute_dtype:
            w_t = w_t.astype(compute_dtype)
    in_dtype = x.dtype
    in_bytes = jnp.dtype(in_dtype).itemsize
    out_bytes = jnp.dtype(out_dtype).itemsize

    # Sublane alignment covering both input and output tiles (8 f32 / 16 bf16).
    sub_align = max(8, 32 // in_bytes, 32 // out_bytes)
    K_pad = _round_up(N_in, LANE)
    N_pad = _round_up(N_out, LANE)

    # --- Generation-aware VMEM budget ----------------------------------------
    vmem_cap = _tpu_vmem_capacity_bytes()                    # 128 MiB v5e/v6e, 64 MiB v7x
    budget = max(24 << 20, min(int(vmem_cap * 0.70), 96 << 20))
    ceiling = max(32 << 20, min(vmem_cap - (16 << 20), 100 << 20))

    # --- Weight-stationary feasibility ---------------------------------------
    # If the whole (padded) W fits comfortably, keep it resident in VMEM:
    # HBM traffic becomes one pass over x + one over W + one over out.
    w_fixed = 2 * K_pad * N_pad * in_bytes + 2 * N_pad * 4       # W + bias (dbl-buf)
    ws_per_row = (2 * K_pad * in_bytes                            # x tile (dbl-buf)
                  + 2 * N_pad * out_bytes                         # out tile (dbl-buf)
                  + N_pad * 4)                                    # f32 matmul temp
    ws_bb_fit = (budget - w_fixed) // ws_per_row if budget > w_fixed else 0
    use_ws = (block_n is None and block_k is None
              and w_fixed <= int(0.6 * budget)
              and ws_bb_fit >= min(_round_up(B, sub_align), 256))

    if use_ws:
        blk_k, blk_n = K_pad, N_pad
        K_eff, N_eff = K_pad, N_pad
        max_bb = max(sub_align, int(min(ws_bb_fit, 2048)))
        if block_b is None:
            B_pad, blk_b = _pick_batch_tiling(B, sub_align, max_bb)
        else:
            blk_b = max(sub_align, (block_b // sub_align) * sub_align)
            blk_b = min(blk_b, _round_up(B, sub_align))
            B_pad = _round_up(B, blk_b)
    else:
        blk_b, blk_n, blk_k, B_pad, N_eff, K_eff = _select_tiled_blocks(
            B, K_pad, N_pad, in_bytes, out_bytes, sub_align, budget,
            block_b, block_n, block_k)

    # --- Megacore coverage (v7x has 2 TCs): aim for >= 2 parallel tiles -------
    if (block_b is None
            and (B_pad // blk_b) * (N_eff // blk_n) < 2
            and _round_up(B, sub_align) >= 2 * sub_align):
        blk_b = _round_up(_cdiv(_round_up(B, sub_align), 2), sub_align)
        B_pad = _round_up(B, blk_b)

    # --- Pad operands only when needed (zero padding keeps the math exact) ----
    xp = x if (B_pad == B and K_eff == N_in) else jnp.pad(
        x, ((0, B_pad - B), (0, K_eff - N_in)))
    wp = w_t if (K_eff == N_in and N_eff == N_out) else jnp.pad(
        w_t, ((0, K_eff - N_in), (0, N_eff - N_out)))
    bp = b.reshape(1, -1).astype(jnp.float32)
    if N_eff != N_out:
        bp = jnp.pad(bp, ((0, 0), (0, N_eff - N_out)))

    # --- Build the pallas_call -------------------------------------------------
    if use_ws:
        grid = (B_pad // blk_b,)
        footprint = (2 * blk_b * K_eff * in_bytes        # x tiles (dbl-buf)
                     + 2 * K_eff * N_eff * in_bytes      # resident W (dbl alloc)
                     + 2 * N_eff * 4                     # bias
                     + 2 * blk_b * N_eff * out_bytes     # out tiles (dbl-buf)
                     + blk_b * N_eff * 4)                # f32 matmul temp
        bytes_accessed = (xp.size * in_bytes + wp.size * in_bytes
                          + bp.size * 4 + B_pad * N_eff * out_bytes)
        grid_spec = pltpu.PrefetchScalarGridSpec(
            num_scalar_prefetch=0,
            grid=grid,
            in_specs=[
                pl.BlockSpec((blk_b, K_eff), lambda i: (i, 0)),    # x
                pl.BlockSpec((K_eff, N_eff), lambda i: (0, 0)),    # W^T (resident)
                pl.BlockSpec((1, N_eff), lambda i: (0, 0)),        # bias
            ],
            out_specs=pl.BlockSpec((blk_b, N_eff), lambda i: (i, 0)),
        )
        kernel = _full_kernel_ws
        dims = ("parallel",)
    else:
        grid = (B_pad // blk_b, N_eff // blk_n, K_eff // blk_k)
        footprint = (2 * blk_b * blk_k * in_bytes        # x tiles
                     + 2 * blk_k * blk_n * in_bytes      # W tiles
                     + 2 * blk_n * 4                     # bias
                     + 2 * blk_b * blk_n * out_bytes     # out tiles
                     + blk_b * blk_n * 4)                # f32 accumulator
        bytes_accessed = (xp.size * in_bytes * (N_eff // blk_n)    # x re-streamed / N tile
                          + wp.size * in_bytes * (B_pad // blk_b)  # W re-streamed / B tile
                          + bp.size * 4 * (B_pad // blk_b)
                          + B_pad * N_eff * out_bytes)
        grid_spec = pltpu.PrefetchScalarGridSpec(
            num_scalar_prefetch=0,
            grid=grid,
            in_specs=[
                pl.BlockSpec((blk_b, blk_k), lambda i, j, k: (i, k)),   # x
                pl.BlockSpec((blk_k, blk_n), lambda i, j, k: (k, j)),   # W^T
                pl.BlockSpec((1, blk_n), lambda i, j, k: (0, j)),       # bias
            ],
            out_specs=pl.BlockSpec((blk_b, blk_n), lambda i, j, k: (i, j)),
            scratch_shapes=[pltpu.VMEM((blk_b, blk_n), jnp.float32)],
        )
        kernel = _full_kernel_acc
        dims = ("parallel", "parallel", "arbitrary")

    # Footprint-derived VMEM limit with a per-generation ceiling; never below
    # the actual footprint.
    vmem_limit = int(max(
        min(max(int(footprint * 1.25), 24 << 20), ceiling),
        footprint + (2 << 20)))

    cost = pl.CostEstimate(
        flops=2 * B_pad * K_eff * N_eff,
        transcendentals=0,
        bytes_accessed=int(bytes_accessed),
    )

    out = pl.pallas_call(
        kernel,
        out_shape=jax.ShapeDtypeStruct((B_pad, N_eff), out_dtype),
        grid_spec=grid_spec,
        compiler_params=pltpu.CompilerParams(
            dimension_semantics=dims,
            vmem_limit_bytes=vmem_limit,
        ),
        cost_estimate=cost,
    )(xp, wp, bp)

    return out[:B, :N_out]


if __name__ == "__main__":
    key = jax.random.PRNGKey(0)
    k_x, k_w, k_b = jax.random.split(key, 3)

    # --- Test 1: small f32, weight-stationary path (exact check) --------------
    B, N_in, N_out = 8, 32, 32
    bound = 1.0 / (N_in ** 0.5)
    x = jax.random.normal(k_x, (B, N_in), jnp.float32)
    w = jax.random.uniform(k_w, (N_out, N_in), jnp.float32, -bound, bound)  # torch layout
    b = jax.random.uniform(k_b, (N_out,), jnp.float32, -bound, bound)
    w_t = jnp.transpose(w)                                   # (N_in, N_out)

    out = full_forward(x, w_t, b)
    jax.block_until_ready(out)
    ref = jnp.maximum(x @ w.T + b, 0.0)
    assert out.shape == (B, N_out)
    assert jnp.allclose(out, ref, atol=1e-5, rtol=1e-5)

    # --- Test 2: bf16 operands, ragged non-128-aligned shapes (padding path) --
    B2, N_in2, N_out2 = 20, 96, 72
    x2 = jax.random.normal(jax.random.PRNGKey(1), (B2, N_in2), jnp.float32)
    w2 = jax.random.uniform(jax.random.PRNGKey(2), (N_out2, N_in2), jnp.float32, -0.1, 0.1)
    b2 = jax.random.uniform(jax.random.PRNGKey(3), (N_out2,), jnp.float32, -0.1, 0.1)
    out2 = full_forward(x2, jnp.transpose(w2), b2, compute_dtype=jnp.bfloat16)
    jax.block_until_ready(out2)
    x2b = x2.astype(jnp.bfloat16).astype(jnp.float32)
    w2b = w2.astype(jnp.bfloat16).astype(jnp.float32)
    ref2 = jnp.maximum(x2b @ w2b.T + b2, 0.0)
    assert out2.shape == (B2, N_out2)
    assert jnp.allclose(out2, ref2, atol=2e-2, rtol=2e-2)

    # --- Test 3: force the K-accumulating tiled path (explicit block_k) -------
    B3, N_in3, N_out3 = 64, 256, 384
    x3 = jax.random.normal(jax.random.PRNGKey(4), (B3, N_in3), jnp.float32)
    w3 = jax.random.uniform(jax.random.PRNGKey(5), (N_out3, N_in3), jnp.float32,
                            -1.0 / (N_in3 ** 0.5), 1.0 / (N_in3 ** 0.5))
    b3 = jax.random.uniform(jax.random.PRNGKey(6), (N_out3,), jnp.float32, -0.05, 0.05)
    out3 = full_forward(x3, jnp.transpose(w3), b3, block_k=128)
    jax.block_until_ready(out3)
    ref3 = jnp.maximum(x3 @ w3.T + b3, 0.0)
    assert out3.shape == (B3, N_out3)
    assert jnp.allclose(out3, ref3, atol=1e-4, rtol=1e-4)

    print("KERNEL_OK")
</pallas_src>

<mosaic_0001>
module attributes {stable_mosaic.version = 11 : i64} {
  func.func @_full_kernel_ws(%arg0: i32, %arg1: memref<8x128xf32, #tpu.memory_space<vmem>>, %arg2: memref<128x128xf32, #tpu.memory_space<vmem>>, %arg3: memref<1x128xf32, #tpu.memory_space<vmem>>, %arg4: memref<8x128xf32, #tpu.memory_space<vmem>>) attributes {dimension_semantics = [#tpu.dimension_semantics<parallel>], iteration_bounds = array<i64: 1>, scalar_prefetch = 0 : i64, scratch_operands = 0 : i64, tpu.core_type = #tpu.core_type<tc>, window_params = [{transform_indices = @transform_0, window_bounds = array<i64: 8, 128>}, {pipeline_mode = #tpu.pipeline_mode<synchronous>, transform_indices = @transform_1, window_bounds = array<i64: 128, 128>}, {pipeline_mode = #tpu.pipeline_mode<synchronous>, transform_indices = @transform_2, window_bounds = array<i64: 1, 128>}, {transform_indices = @transform_3, window_bounds = array<i64: 8, 128>}]} {
    %c0 = arith.constant 0 : index
    %c0_0 = arith.constant 0 : index
    %0 = vector.load %arg1[%c0, %c0_0] : memref<8x128xf32, #tpu.memory_space<vmem>>, vector<8x128xf32>
    %c0_1 = arith.constant 0 : index
    %c0_2 = arith.constant 0 : index
    %1 = vector.load %arg2[%c0_1, %c0_2] : memref<128x128xf32, #tpu.memory_space<vmem>>, vector<128x128xf32>
    %cst = arith.constant dense<0.000000e+00> : vector<8x128xf32>
    %2 = tpu.matmul %0, %1, %cst {dimension_numbers = #tpu.dot_dimension_numbers<[1], [0], [0], [1], [0, 0, 1, 1], [], []>} : vector<8x128xf32>, vector<128x128xf32>, vector<8x128xf32> -> vector<8x128xf32>
    %c0_3 = arith.constant 0 : index
    %c0_4 = arith.constant 0 : index
    %3 = vector.load %arg3[%c0_3, %c0_4] : memref<1x128xf32, #tpu.memory_space<vmem>>, vector<1x128xf32>
    %4 = vector.broadcast %3 : vector<1x128xf32> to vector<8x128xf32>
    %5 = arith.addf %2, %4 : vector<8x128xf32>
    %cst_5 = arith.constant 0.000000e+00 : f32
    %6 = vector.broadcast %cst_5 : f32 to vector<8x128xf32>
    %7 = arith.maximumf %5, %6 : vector<8x128xf32>
    %c0_6 = arith.constant 0 : index
    %c0_7 = arith.constant 0 : index
    %8 = vector.load %arg4[%c0_6, %c0_7] : memref<8x128xf32, #tpu.memory_space<vmem>>, vector<8x128xf32>
    tpu.vector_store %arg4[%c0_6, %c0_7], %7 {strides = array<i32>} : memref<8x128xf32, #tpu.memory_space<vmem>>, vector<8x128xf32>,
    return
  }
  func.func @transform_0(%arg0: i32) -> (i32, i32) {
    %c0_i32 = arith.constant 0 : i32
    %c0_i32_0 = arith.constant 0 : i32
    return %arg0, %c0_i32 : i32, i32
  }
  func.func @transform_1(%arg0: i32) -> (i32, i32) {
    %c0_i32 = arith.constant 0 : i32
    %c0_i32_0 = arith.constant 0 : i32
    %c0_i32_1 = arith.constant 0 : i32
    return %c0_i32, %c0_i32_0 : i32, i32
  }
  func.func @transform_2(%arg0: i32) -> (i32, i32) {
    %c0_i32 = arith.constant 0 : i32
    %c0_i32_0 = arith.constant 0 : i32
    %c0_i32_1 = arith.constant 0 : i32
    return %c0_i32, %c0_i32_0 : i32, i32
  }
  func.func @transform_3(%arg0: i32) -> (i32, i32) {
    %c0_i32 = arith.constant 0 : i32
    %c0_i32_0 = arith.constant 0 : i32
    return %arg0, %c0_i32 : i32, i32
  }
}

</mosaic_0001>

<llo_original>
// kernel: full_forward.1
$region0: #{full_forward.1}
  #allocation0 [shape = 'u32[]', space=smem, size = 0x4, offset = 0x4, fixed_abs, tag = 'smem constant byte address 0x4 - core index']
  #allocation1 [shape = 'u32[144,128]{1,0:T(1,128)}', space=vmem, size = 0x12000, scoped, tag = 'internal scratch']
  %s0 = inlined_call_operand.vmem [shape: f32[8,128], index: 0, kind: input, shape index: {}]
  %s1 = inlined_call_operand.vmem [shape: f32[128,128], index: 1, kind: input, shape index: {}]
  %s2 = inlined_call_operand.vmem [shape: f32[1,128], index: 2, kind: input, shape index: {}]
  %s3 = inlined_call_operand.hbm [shape: f32[8,128], index: 3, kind: output, shape index: {}]
  %s4 = sld [smem:[#allocation0]]
  $region22: #{full_forward.1} parent=0
    _
  %s6 = ssub.s32 1, %s4
  %s7 = scalar_select 0, %s6, %s4
  $region1: #{full_forward.1} parent=0
    #allocation2 [shape = 'u8[4096]{0}', space=vmem, size = 0x1000, scoped, tag = 'output window, operand 0, single buffered']
    #allocation3 [shape = 's32[1]{0}', space=sflag, size = 0x4, scoped, tag = 'scoped memory for full_forward.1']
    %8 = vsyncpa [#allocation3], 0
    // Predicated region
    $region2: #{full_forward.1} parent=1 // pred_check
      _
    $region3: #{full_forward.1} parent=1 // pred_check_branch
      %10 = sbr.rel (0) target = $region5
    $region4: #{full_forward.1} parent=1 // pred_region
      _
    $region5: #{full_forward.1} parent=1 // pred_fallthru
      _
    // Predicated region
    $region6: #{full_forward.1} parent=1 // pred_check
      _
    $region7: #{full_forward.1} parent=1 // pred_check_branch
      %12 = sbr.rel (0) target = $region9
    $region8: #{full_forward.1} parent=1 // pred_region
      _
    $region9: #{full_forward.1} parent=1 // pred_fallthru
      _
    // Predicated region
    $region10: #{full_forward.1} parent=1 // pred_check
      _
    $region11: #{full_forward.1} parent=1 // pred_check_branch
      %14 = sbr.rel (0) target = $region13
    $region12: #{full_forward.1} parent=1 // pred_region
      _
    $region13: #{full_forward.1} parent=1 // pred_fallthru
      _
    %v15 = vld [vmem:[%s0] sm:$0xff]
    %v16 = vld [vmem:[%s1] sm:$0xff]
    %v17 = vld [vmem:[%s1 + $0x8] sm:$0xff]
    %v18 = vld [vmem:[%s1 + $0x10] sm:$0xff]
    %v19 = vld [vmem:[%s1 + $0x18] sm:$0xff]
    %v20 = vld [vmem:[%s1 + $0x20] sm:$0xff]
    %v21 = vld [vmem:[%s1 + $0x28] sm:$0xff]
    %v22 = vld [vmem:[%s1 + $0x30] sm:$0xff]
    %v23 = vld [vmem:[%s1 + $0x38] sm:$0xff]
    %v24 = vld [vmem:[%s1 + $0x40] sm:$0xff]
    %v25 = vld [vmem:[%s1 + $0x48] sm:$0xff]
    %v26 = vld [vmem:[%s1 + $0x50] sm:$0xff]
    %v27 = vld [vmem:[%s1 + $0x58] sm:$0xff]
    %v28 = vld [vmem:[%s1 + $0x60] sm:$0xff]
    %v29 = vld [vmem:[%s1 + $0x68] sm:$0xff]
    %v30 = vld [vmem:[%s1 + $0x70] sm:$0xff]
    %v31 = vld [vmem:[%s1 + $0x78] sm:$0xff]
    %v32 = vld [vmem:[%s2] sm:$0x1]
    %v34 = vlaneseq
    %v35 = vshrl.u32 %v34, 7
    %v36 = vsub.s32 0, %v35
    %v37 = vrot.slane %v32, %v36
    %39 = vmatprep.subr.mxu0 0.0
    %40 = vmatpush1.msra.mxu0 %v31
    %41 = vmatprep.subr.mxu0 0.0
    %42 = vmatpush1.msra.mxu0 %v30
    %43 = vmatprep.subr.mxu0 0.0
    %44 = vmatpush1.msra.mxu0 %v29
    %45 = vmatprep.subr.mxu0 0.0
    %46 = vmatpush1.msra.mxu0 %v28
    %47 = vmatprep.subr.mxu0 0.0
    %48 = vmatpush1.msra.mxu0 %v27
    %49 = vmatprep.subr.mxu0 0.0
    %50 = vmatpush1.msra.mxu0 %v26
    %51 = vmatprep.subr.mxu0 0.0
    %52 = vmatpush1.msra.mxu0 %v25
    %53 = vmatprep.subr.mxu0 0.0
    %54 = vmatpush1.msra.mxu0 %v24
    %55 = vmatprep.subr.mxu0 0.0
    %56 = vmatpush1.msra.mxu0 %v23
    %57 = vmatprep.subr.mxu0 0.0
    %58 = vmatpush1.msra.mxu0 %v22
    %59 = vmatprep.subr.mxu0 0.0
    %60 = vmatpush1.msra.mxu0 %v21
    %61 = vmatprep.subr.mxu0 0.0
    %62 = vmatpush1.msra.mxu0 %v20
    %63 = vmatprep.subr.mxu0 0.0
    %64 = vmatpush1.msra.mxu0 %v19
    %65 = vmatprep.subr.mxu0 0.0
    %66 = vmatpush1.msra.mxu0 %v18
    %67 = vmatprep.subr.mxu0 0.0
    %68 = vmatpush1.msra.mxu0 %v17
    %69 = vmatprep.subr.mxu0 0.0
    %70 = vmatpush1.msra.mxu0 %v16
    %71 = vmatprep.subr.mxu0 0.0
    %72 = vmatpush2.msra.mxu0 0.0
    %73 = vmatprep.subr.mxu0 0.0
    %74 = vmatpush2.msra.mxu0 0.0
    %75 = vmatprep.subr.mxu0 0.0
    %76 = vmatpush2.msra.mxu0 0.0
    %77 = vmatprep.subr.mxu0 0.0
    %78 = vmatpush2.msra.mxu0 0.0
    %79 = vmatprep.subr.mxu0 0.0
    %80 = vmatpush2.msra.mxu0 0.0
    %81 = vmatprep.subr.mxu0 0.0
    %82 = vmatpush2.msra.mxu0 0.0
    %83 = vmatprep.subr.mxu0 0.0
    %84 = vmatpush2.msra.mxu0 0.0
    %85 = vmatprep.subr.mxu0 0.0
    %86 = vmatpush2.msra.mxu0 0.0
    %87 = vmatprep.subr.mxu0 0.0
    %88 = vmatpush2.msra.mxu0 0.0
    %89 = vmatprep.subr.mxu0 0.0
    %90 = vmatpush2.msra.mxu0 0.0
    %91 = vmatprep.subr.mxu0 0.0
    %92 = vmatpush2.msra.mxu0 0.0
    %93 = vmatprep.subr.mxu0 0.0
    %94 = vmatpush2.msra.mxu0 0.0
    %95 = vmatprep.subr.mxu0 0.0
    %96 = vmatpush2.msra.mxu0 0.0
    %97 = vmatprep.subr.mxu0 0.0
    %98 = vmatpush2.msra.mxu0 0.0
    %99 = vmatprep.subr.mxu0 0.0
    %100 = vmatpush2.msra.mxu0 0.0
    %101 = vmatprep.subr.mxu0 0.0
    %102 = vmatpush2.msra.mxu0 0.0
    %103 = vmatprep.mubr.f32.mxu0 0.0
    %104 = vmatmul.mubr.f32.gmra.mxu0 %v15
    %v105 = vpop.f32.mrf.mxu0
    %v106 = vadd.f32 %v37, %v105
    %v107 = vpop.f32.mrf.mxu0
    %108 = vdwg.mxu0
    %v109 = vmax.f32 %v106, 0.0
    %110 = vst [vmem:[#allocation2] sm:$0xff] %v109
    // Predicated region
    $region14: #{full_forward.1} parent=1 // pred_check
      _
    $region15: #{full_forward.1} parent=1 // pred_check_branch
      %112 = sbr.rel (0) target = $region17
    $region16: #{full_forward.1} parent=1 // pred_region
      %s114 = ssub.s32 128, 128
      %115 = vsyncadd [#allocation3], %s114
      %s117 = sshll.u32 [#allocation2], 4
      %s118 = int_to_ptr.vmem [resolvable:$true] %s117
      %120 = dma.vmem_to_hbm [thread:$0]  %s118, 128, %s3, [#allocation3]
    $region17: #{full_forward.1} parent=1 // pred_fallthru
      _
    // Predicated region
    $region18: #{full_forward.1} parent=1 // pred_check
      _
    $region19: #{full_forward.1} parent=1 // pred_check_branch
      %122 = sbr.rel (0) target = $region21
    $region20: #{full_forward.1} parent=1 // pred_region
      %123 = dma.done [#allocation3], 128
    $region21: #{full_forward.1} parent=1 // pred_fallthru
      _
    %124 = vsyncpa [#allocation3], 1

</llo_original>
